<compile_context>
chip_gen: v7x
topology: tpu7x:2x2x1
jax: 0.10.0
libtpu: 0.0.40
codegen_flags: <defaults>
</compile_context>

<pallas_src>
import math

import jax
import jax.numpy as jnp
from jax.experimental import pallas as pl
from jax.experimental.pallas import tpu as pltpu


def _round_up(x, m):
    return ((x + m - 1) // m) * m


def _make_kernel(single_n_step):
    def kernel(x_ref, w_ref, cs_ref, seg_ref, o_ref):
        """One grid step: TB batch elements x TN rows each.

        x_ref  : (TB, TN, Dp)  padded input rows for this (batch, N) block
        w_ref  : (Dp, Fc)      fused [w_plus | w_minus] weight (resident)
        cs_ref : (1, Fc)       per-column scale: +v_plus/sqrt(F), -v_minus/sqrt(F), 0
        seg_ref: (TB, TB*TN)   segment-sum matrix (1 where row belongs to batch b)
        o_ref  : (TB, 128)     per-batch partial/final result (lane-dense)
        """
        tb, tn, dp = x_ref.shape
        # Collapse leading dims only (TN % 8 == 0 -> layout-preserving).
        xf = x_ref[...].reshape(tb * tn, dp)                                    # (M, Dp)
        # Single MXU matmul over all rows and both filter banks.
        z = jnp.dot(xf, w_ref[...], preferred_element_type=jnp.float32)         # (M, Fc)
        zr = jnp.maximum(z, 0.0)                                                 # VPU relu
        # Per-batch aggregation of rows on the MXU (no sublane reshuffles).
        seg_sum = jnp.dot(seg_ref[...], zr, preferred_element_type=jnp.float32)  # (TB, Fc)
        # Signed scaling (v_plus, -v_minus, 1/sqrt(F)) on the small tile only.
        scaled = seg_sum * cs_ref[...]                                           # (TB, Fc)
        sums = jnp.sum(scaled, axis=1, keepdims=True)                            # (TB, 1)
        bc = jnp.broadcast_to(sums, o_ref.shape)

        if single_n_step:
            o_ref[...] = bc
        else:
            @pl.when(pl.program_id(1) == 0)
            def _():
                o_ref[...] = jnp.zeros_like(o_ref)
            o_ref[...] += bc

    return kernel


def conv_with_last_layer_forward(x, w_plus, w_minus, v_plus, v_minus):
    """x: (B, N, D) f32; w_*: (D, F) f32; v_*: (1,) f32  ->  (B,) f32."""
    B, N, D = x.shape
    F = w_plus.shape[1]
    f32 = jnp.float32

    Dp = _round_up(max(D, 128), 128)      # contraction dim, lane/MXU dense
    Fc = _round_up(2 * F, 128)            # fused output width, lane dense
    w_bytes = Dp * Fc * 4

    # ---- tile selection (keep blocks comfortably inside scoped VMEM) -------
    budget = 24 << 20

    def fits(tb, tn):
        rows = tb * tn
        x_bytes = 2 * rows * Dp * 4        # input block, double-buffered
        seg_bytes = tb * rows * 4          # segment matrix (resident)
        z_bytes = rows * Fc * 4            # matmul intermediate
        return rows <= 4096 and (w_bytes + x_bytes + seg_bytes + z_bytes) <= budget

    TN = min(_round_up(N, 8), 512)         # rows per batch element per step
    while TN > 8 and not fits(8, TN):
        TN = max(8, _round_up(TN // 2, 8))
    TB = 8                                 # batch elements per step
    max_tb = _round_up(B, 8)
    while TB * 2 <= max_tb and fits(TB * 2, TN):
        TB *= 2

    Np = _round_up(N, TN)
    Bp = _round_up(B, TB)
    n_b = Bp // TB
    n_n = Np // TN
    M = TB * TN                            # rows per grid step / per matmul

    # ---- host-side layout prep (zero padding never changes the result) -----
    xp = jnp.zeros((Bp, Np, Dp), f32).at[:B, :N, :D].set(x.astype(f32))

    w_cat = jnp.zeros((Dp, Fc), f32)
    w_cat = w_cat.at[:D, :F].set(w_plus.astype(f32))
    w_cat = w_cat.at[:D, F:2 * F].set(w_minus.astype(f32))

    inv = 1.0 / math.sqrt(F)
    col_scale = jnp.zeros((1, Fc), f32)
    col_scale = col_scale.at[0, :F].set(inv * v_plus[0])
    col_scale = col_scale.at[0, F:2 * F].set(-inv * v_minus[0])

    # seg[b, r] = 1.0 iff flattened row r belongs to (local) batch element b.
    seg = (jnp.arange(TB, dtype=jnp.int32)[:, None]
           == (jnp.arange(M, dtype=jnp.int32) // TN)[None, :]).astype(f32)

    kernel = _make_kernel(single_n_step=(n_n == 1))

    out = pl.pallas_call(
        kernel,
        out_shape=jax.ShapeDtypeStruct((Bp, 128), f32),
        grid=(n_b, n_n),
        in_specs=[
            pl.BlockSpec((TB, TN, Dp), lambda ib, inn: (ib, inn, 0)),  # x block
            pl.BlockSpec((Dp, Fc), lambda ib, inn: (0, 0)),            # fused weights
            pl.BlockSpec((1, Fc), lambda ib, inn: (0, 0)),             # column scales
            pl.BlockSpec((TB, M), lambda ib, inn: (0, 0)),             # segment matrix
        ],
        out_specs=pl.BlockSpec((TB, 128), lambda ib, inn: (ib, 0)),    # resident over N axis
        compiler_params=pltpu.CompilerParams(
            dimension_semantics=("parallel", "arbitrary"),             # megacore-safe
            vmem_limit_bytes=32 * 1024 * 1024,                         # fits v5e/v6e/v7x
        ),
    )(xp, w_cat, col_scale, seg)

    return out[:B, 0]


def _reference(x, w_plus, w_minus, v_plus, v_minus):
    F = w_plus.shape[1]
    xp = jnp.maximum(x @ w_plus, 0.0)
    xm = jnp.maximum(x @ w_minus, 0.0)
    return (1.0 / math.sqrt(F)) * (
        v_plus[0] * jnp.sum(xp, axis=(1, 2)) - v_minus[0] * jnp.sum(xm, axis=(1, 2)))


if __name__ == "__main__":
    # Small shapes consistent with the module's forward: x is (B, N, feat_dim).
    B, N, feat_dim, num_filters = 2, 8, 32, 64
    std_v = 1.0 / math.sqrt(feat_dim)

    key = jax.random.PRNGKey(0)
    kx, kwp, kwm, kv = jax.random.split(key, 4)

    x = jax.random.normal(kx, (B, N, feat_dim), dtype=jnp.float32)
    w_plus = jax.random.uniform(kwp, (feat_dim, num_filters),
                                minval=-std_v, maxval=std_v, dtype=jnp.float32)
    w_minus = jax.random.uniform(kwm, (feat_dim, num_filters),
                                 minval=-std_v, maxval=std_v, dtype=jnp.float32)
    # reset_parameters(): v_plus and v_minus share the same uniform [0,1) init.
    out_init = jax.random.uniform(kv, (1,), dtype=jnp.float32)
    v_plus = out_init
    v_minus = out_init

    out = conv_with_last_layer_forward(x, w_plus, w_minus, v_plus, v_minus)
    out = jax.block_until_ready(out)

    ref = _reference(x, w_plus, w_minus, v_plus, v_minus)
    assert out.shape == (B,)
    assert jnp.allclose(out, ref, rtol=1e-3, atol=1e-4), (out, ref)

    print("KERNEL_OK")
</pallas_src>

<mosaic_0001>
module attributes {stable_mosaic.version = 11 : i64} {
  func.func @kernel(%arg0: i32, %arg1: i32, %arg2: memref<8x8x128xf32, #tpu.memory_space<vmem>>, %arg3: memref<128x128xf32, #tpu.memory_space<vmem>>, %arg4: memref<1x128xf32, #tpu.memory_space<vmem>>, %arg5: memref<8x64xf32, #tpu.memory_space<vmem>>, %arg6: memref<8x128xf32, #tpu.memory_space<vmem>>) attributes {dimension_semantics = [#tpu.dimension_semantics<parallel>, #tpu.dimension_semantics<arbitrary>], iteration_bounds = array<i64: 1, 1>, scalar_prefetch = 0 : i64, scratch_operands = 0 : i64, tpu.core_type = #tpu.core_type<tc>, window_params = [{transform_indices = @transform_0, window_bounds = array<i64: 8, 8, 128>}, {pipeline_mode = #tpu.pipeline_mode<synchronous>, transform_indices = @transform_1, window_bounds = array<i64: 128, 128>}, {pipeline_mode = #tpu.pipeline_mode<synchronous>, transform_indices = @transform_2, window_bounds = array<i64: 1, 128>}, {pipeline_mode = #tpu.pipeline_mode<synchronous>, transform_indices = @transform_3, window_bounds = array<i64: 8, 64>}, {transform_indices = @transform_4, window_bounds = array<i64: 8, 128>}]} {
    %c0 = arith.constant 0 : index
    %c0_0 = arith.constant 0 : index
    %c0_1 = arith.constant 0 : index
    %0 = vector.load %arg2[%c0, %c0_0, %c0_1] : memref<8x8x128xf32, #tpu.memory_space<vmem>>, vector<8x8x128xf32>
    %1 = vector.shape_cast %0 : vector<8x8x128xf32> to vector<64x128xf32>
    %c0_2 = arith.constant 0 : index
    %c0_3 = arith.constant 0 : index
    %2 = vector.load %arg3[%c0_2, %c0_3] : memref<128x128xf32, #tpu.memory_space<vmem>>, vector<128x128xf32>
    %cst = arith.constant dense<0.000000e+00> : vector<64x128xf32>
    %3 = tpu.matmul %1, %2, %cst {dimension_numbers = #tpu.dot_dimension_numbers<[1], [0], [0], [1], [0, 0, 1, 1], [], []>} : vector<64x128xf32>, vector<128x128xf32>, vector<64x128xf32> -> vector<64x128xf32>
    %cst_4 = arith.constant 0.000000e+00 : f32
    %4 = vector.broadcast %cst_4 : f32 to vector<64x128xf32>
    %5 = arith.maximumf %3, %4 : vector<64x128xf32>
    %c0_5 = arith.constant 0 : index
    %c0_6 = arith.constant 0 : index
    %6 = vector.load %arg5[%c0_5, %c0_6] : memref<8x64xf32, #tpu.memory_space<vmem>>, vector<8x64xf32>
    %cst_7 = arith.constant dense<0.000000e+00> : vector<8x128xf32>
    %7 = tpu.matmul %6, %5, %cst_7 {dimension_numbers = #tpu.dot_dimension_numbers<[1], [0], [0], [1], [0, 0, 1, 1], [], []>} : vector<8x64xf32>, vector<64x128xf32>, vector<8x128xf32> -> vector<8x128xf32>
    %c0_8 = arith.constant 0 : index
    %c0_9 = arith.constant 0 : index
    %8 = vector.load %arg4[%c0_8, %c0_9] : memref<1x128xf32, #tpu.memory_space<vmem>>, vector<1x128xf32>
    %9 = vector.broadcast %8 : vector<1x128xf32> to vector<8x128xf32>
    %10 = arith.mulf %7, %9 : vector<8x128xf32>
    %cst_10 = arith.constant dense<0.000000e+00> : vector<8xf32>
    %11 = vector.multi_reduction <add>, %10, %cst_10 [1] : vector<8x128xf32> to vector<8xf32>
    %12 = vector.shape_cast %11 : vector<8xf32> to vector<8x1xf32>
    %13 = vector.shape_cast %12 : vector<8x1xf32> to vector<8x1xf32>
    %14 = vector.broadcast %13 : vector<8x1xf32> to vector<8x128xf32>
    %c0_11 = arith.constant 0 : index
    %c0_12 = arith.constant 0 : index
    %15 = vector.load %arg6[%c0_11, %c0_12] : memref<8x128xf32, #tpu.memory_space<vmem>>, vector<8x128xf32>
    tpu.vector_store %arg6[%c0_11, %c0_12], %14 {strides = array<i32>} : memref<8x128xf32, #tpu.memory_space<vmem>>, vector<8x128xf32>,
    return
  }
  func.func @transform_0(%arg0: i32, %arg1: i32) -> (i32, i32, i32) {
    %c0_i32 = arith.constant 0 : i32
    %c0_i32_0 = arith.constant 0 : i32
    return %arg0, %arg1, %c0_i32 : i32, i32, i32
  }
  func.func @transform_1(%arg0: i32, %arg1: i32) -> (i32, i32) {
    %c0_i32 = arith.constant 0 : i32
    %c0_i32_0 = arith.constant 0 : i32
    %c0_i32_1 = arith.constant 0 : i32
    return %c0_i32, %c0_i32_0 : i32, i32
  }
  func.func @transform_2(%arg0: i32, %arg1: i32) -> (i32, i32) {
    %c0_i32 = arith.constant 0 : i32
    %c0_i32_0 = arith.constant 0 : i32
    %c0_i32_1 = arith.constant 0 : i32
    return %c0_i32, %c0_i32_0 : i32, i32
  }
  func.func @transform_3(%arg0: i32, %arg1: i32) -> (i32, i32) {
    %c0_i32 = arith.constant 0 : i32
    %c0_i32_0 = arith.constant 0 : i32
    %c0_i32_1 = arith.constant 0 : i32
    return %c0_i32, %c0_i32_0 : i32, i32
  }
  func.func @transform_4(%arg0: i32, %arg1: i32) -> (i32, i32) {
    %c0_i32 = arith.constant 0 : i32
    %c0_i32_0 = arith.constant 0 : i32
    return %arg0, %c0_i32 : i32, i32
  }
}

</mosaic_0001>

<llo_original>
// kernel: tpu_custom_call.1
$region0: #{tpu_custom_call.1}
  #allocation0 [shape = 'u32[]', space=smem, size = 0x4, offset = 0x4, fixed_abs, tag = 'smem constant byte address 0x4 - core index']
  #allocation1 [shape = 'u32[144,128]{1,0:T(1,128)}', space=vmem, size = 0x12000, scoped, tag = 'internal scratch']
  %s0 = inlined_call_operand.hbm [shape: f32[8,8,128], index: 0, kind: input, shape index: {}]
  %s1 = inlined_call_operand.hbm [shape: f32[128,128], index: 1, kind: input, shape index: {}]
  %s2 = inlined_call_operand.vmem [shape: f32[1,128], index: 2, kind: input, shape index: {}]
  %s3 = inlined_call_operand.vmem [shape: f32[8,64], index: 3, kind: input, shape index: {}]
  %s4 = inlined_call_operand.hbm [shape: f32[8,128], index: 4, kind: output, shape index: {}]
  %s5 = sld [smem:[#allocation0]]
  $region34: #{tpu_custom_call.1} parent=0
    _
  %s7 = ssub.s32 1, %s5
  %s8 = scalar_select 0, %s7, %s5
  $region1: #{tpu_custom_call.1} parent=0
    #allocation2 [shape = 'u8[32768]{0}', space=vmem, size = 0x8000, scoped, tag = 'input window, operand 0, single buffered']
    #allocation3 [shape = 's32[1]{0}', space=sflag, size = 0x4, scoped, tag = 'scoped memory for tpu_custom_call.1']
    #allocation4 [shape = 's32[1]{0}', space=sflag, size = 0x4, scoped, tag = 'scoped memory for tpu_custom_call.1']
    #allocation5 [shape = 'u8[65536]{0}', space=vmem, size = 0x10000, scoped, tag = 'input window, operand 1, single buffered']
    #allocation6 [shape = 's32[1]{0}', space=sflag, size = 0x4, scoped, tag = 'scoped memory for tpu_custom_call.1']
    #allocation7 [shape = 'u8[4096]{0}', space=vmem, size = 0x1000, scoped, tag = 'output window, operand 0, single buffered']
    %9 = vsyncpa [#allocation3], 0
    %10 = vsyncpa [#allocation6], 0
    %11 = vsyncpa [#allocation4], 0
    // Predicated region
    $region2: #{tpu_custom_call.1} parent=1 // pred_check
      _
    $region3: #{tpu_custom_call.1} parent=1 // pred_check_branch
      %13 = sbr.rel (0) target = $region5
    $region4: #{tpu_custom_call.1} parent=1 // pred_region
      %s15 = ssub.s32 1024, 1024
      %16 = vsyncadd [#allocation3], %s15
      %s17 = sshll.u32 [#allocation2], 4
      %s18 = int_to_ptr.vmem [resolvable:$true] %s17
      %23 = dma.hbm_to_vmem [thread:$0]  %s0, 1024, %s18, [#allocation3], 128, 128, 8
    $region5: #{tpu_custom_call.1} parent=1 // pred_fallthru
      _
    // Predicated region
    $region6: #{tpu_custom_call.1} parent=1 // pred_check
      _
    $region7: #{tpu_custom_call.1} parent=1 // pred_check_branch
      %25 = sbr.rel (0) target = $region9
    $region8: #{tpu_custom_call.1} parent=1 // pred_region
      %s27 = ssub.s32 2048, 2048
      %28 = vsyncadd [#allocation6], %s27
      %s29 = sshll.u32 [#allocation5], 4
      %s30 = int_to_ptr.vmem [resolvable:$true] %s29
      %35 = dma.hbm_to_vmem [thread:$0]  %s1, 2048, %s30, [#allocation6], 128, 128, 8
    $region9: #{tpu_custom_call.1} parent=1 // pred_fallthru
      _
    // Predicated region
    $region10: #{tpu_custom_call.1} parent=1 // pred_check
      _
    $region11: #{tpu_custom_call.1} parent=1 // pred_check_branch
      %37 = sbr.rel (0) target = $region13
    $region12: #{tpu_custom_call.1} parent=1 // pred_region
      _
    $region13: #{tpu_custom_call.1} parent=1 // pred_fallthru
      _
    // Predicated region
    $region14: #{tpu_custom_call.1} parent=1 // pred_check
      _
    $region15: #{tpu_custom_call.1} parent=1 // pred_check_branch
      %39 = sbr.rel (0) target = $region17
    $region16: #{tpu_custom_call.1} parent=1 // pred_region
      _
    $region17: #{tpu_custom_call.1} parent=1 // pred_fallthru
      _
    // Predicated region
    $region18: #{tpu_custom_call.1} parent=1 // pred_check
      _
    $region19: #{tpu_custom_call.1} parent=1 // pred_check_branch
      %41 = sbr.rel (0) target = $region21
    $region20: #{tpu_custom_call.1} parent=1 // pred_region
      %42 = dma.done [#allocation3], 1024
    $region21: #{tpu_custom_call.1} parent=1 // pred_fallthru
      _
    // Predicated region
    $region22: #{tpu_custom_call.1} parent=1 // pred_check
      _
    $region23: #{tpu_custom_call.1} parent=1 // pred_check_branch
      %44 = sbr.rel (0) target = $region25
    $region24: #{tpu_custom_call.1} parent=1 // pred_region
      %45 = dma.done [#allocation6], 2048
    $region25: #{tpu_custom_call.1} parent=1 // pred_fallthru
      _
    %v46 = vld [vmem:[#allocation2] sm:$0xff]
    %v47 = vld [vmem:[#allocation2 + $0x8] sm:$0xff]
    %v48 = vld [vmem:[#allocation2 + $0x10] sm:$0xff]
    %v49 = vld [vmem:[#allocation2 + $0x18] sm:$0xff]
    %v50 = vld [vmem:[#allocation2 + $0x20] sm:$0xff]
    %v51 = vld [vmem:[#allocation2 + $0x28] sm:$0xff]
    %v52 = vld [vmem:[#allocation2 + $0x30] sm:$0xff]
    %v53 = vld [vmem:[#allocation2 + $0x38] sm:$0xff]
    %v54 = vld [vmem:[#allocation5] sm:$0xff]
    %v55 = vld [vmem:[#allocation5 + $0x8] sm:$0xff]
    %v56 = vld [vmem:[#allocation5 + $0x10] sm:$0xff]
    %v57 = vld [vmem:[#allocation5 + $0x18] sm:$0xff]
    %v58 = vld [vmem:[#allocation5 + $0x20] sm:$0xff]
    %v59 = vld [vmem:[#allocation5 + $0x28] sm:$0xff]
    %v60 = vld [vmem:[#allocation5 + $0x30] sm:$0xff]
    %v61 = vld [vmem:[#allocation5 + $0x38] sm:$0xff]
    %v62 = vld [vmem:[#allocation5 + $0x40] sm:$0xff]
    %v63 = vld [vmem:[#allocation5 + $0x48] sm:$0xff]
    %v64 = vld [vmem:[#allocation5 + $0x50] sm:$0xff]
    %v65 = vld [vmem:[#allocation5 + $0x58] sm:$0xff]
    %v66 = vld [vmem:[#allocation5 + $0x60] sm:$0xff]
    %v67 = vld [vmem:[#allocation5 + $0x68] sm:$0xff]
    %v68 = vld [vmem:[#allocation5 + $0x70] sm:$0xff]
    %v69 = vld [vmem:[#allocation5 + $0x78] sm:$0xff]
    %70 = vmatprep.subr.mxu0 0.0
    %71 = vmatpush1.msra.mxu0 %v54
    %72 = vmatprep.subr.mxu0 0.0
    %73 = vmatpush1.msra.mxu0 %v55
    %74 = vmatprep.subr.mxu0 0.0
    %75 = vmatpush1.msra.mxu0 %v56
    %76 = vmatprep.subr.mxu0 0.0
    %77 = vmatpush1.msra.mxu0 %v57
    %78 = vmatprep.subr.mxu0 0.0
    %79 = vmatpush1.msra.mxu0 %v58
    %80 = vmatprep.subr.mxu0 0.0
    %81 = vmatpush1.msra.mxu0 %v59
    %82 = vmatprep.subr.mxu0 0.0
    %83 = vmatpush1.msra.mxu0 %v60
    %84 = vmatprep.subr.mxu0 0.0
    %85 = vmatpush1.msra.mxu0 %v61
    %86 = vmatprep.subr.mxu0 0.0
    %87 = vmatpush1.msra.mxu0 %v62
    %88 = vmatprep.subr.mxu0 0.0
    %89 = vmatpush1.msra.mxu0 %v63
    %90 = vmatprep.subr.mxu0 0.0
    %91 = vmatpush1.msra.mxu0 %v64
    %92 = vmatprep.subr.mxu0 0.0
    %93 = vmatpush1.msra.mxu0 %v65
    %94 = vmatprep.subr.mxu0 0.0
    %95 = vmatpush1.msra.mxu0 %v66
    %96 = vmatprep.subr.mxu0 0.0
    %97 = vmatpush1.msra.mxu0 %v67
    %98 = vmatprep.subr.mxu0 0.0
    %99 = vmatpush1.msra.mxu0 %v68
    %100 = vmatprep.subr.mxu0 0.0
    %101 = vmatpush1.msra.mxu0 %v69
    %102 = vmatprep.subr.mxu0 0.0
    %103 = vmatpush1.msra.mxu0 0.0
    %104 = vmatprep.subr.mxu0 0.0
    %105 = vmatpush1.msra.mxu0 0.0
    %106 = vmatprep.subr.mxu0 0.0
    %107 = vmatpush1.msra.mxu0 0.0
    %108 = vmatprep.subr.mxu0 0.0
    %109 = vmatpush1.msra.mxu0 0.0
    %110 = vmatprep.subr.mxu0 0.0
    %111 = vmatpush1.msra.mxu0 0.0
    %112 = vmatprep.subr.mxu0 0.0
    %113 = vmatpush1.msra.mxu0 0.0
    %114 = vmatprep.subr.mxu0 0.0
    %115 = vmatpush1.msra.mxu0 0.0
    %116 = vmatprep.subr.mxu0 0.0
    %117 = vmatpush1.msra.mxu0 0.0
    %118 = vmatprep.subr.mxu0 0.0
    %119 = vmatpush1.msra.mxu0 0.0
    %120 = vmatprep.subr.mxu0 0.0
    %121 = vmatpush1.msra.mxu0 0.0
    %122 = vmatprep.subr.mxu0 0.0
    %123 = vmatpush1.msra.mxu0 0.0
    %124 = vmatprep.subr.mxu0 0.0
    %125 = vmatpush1.msra.mxu0 0.0
    %126 = vmatprep.subr.mxu0 0.0
    %127 = vmatpush1.msra.mxu0 0.0
    %128 = vmatprep.subr.mxu0 0.0
    %129 = vmatpush1.msra.mxu0 0.0
    %130 = vmatprep.subr.mxu0 0.0
    %131 = vmatpush1.msra.mxu0 0.0
    %132 = vmatprep.subr.mxu0 0.0
    %133 = vmatpush1.msra.mxu0 0.0
    %134 = vmatprep.mubr.f32.mxu0 0.0
    %135 = vmatmul.mubr.f32.gmra.mrb[0].mxu0 %v46
    %v136 = vpop.f32.mrb[0].mxu0
    %v137 = vadd.f32 0.0, %v136
    %v138 = vpop.f32.mrb[0].mxu0
    %139 = vmatprep.mubr.f32.mxu0 0.0
    %140 = vmatmul.mubr.f32.gmra.mrb[0].mxu0 %v47
    %v141 = vpop.f32.mrb[0].mxu0
    %v142 = vadd.f32 0.0, %v141
    %v143 = vpop.f32.mrb[0].mxu0
    %144 = vmatprep.mubr.f32.mxu0 0.0
    %145 = vmatmul.mubr.f32.gmra.mrb[0].mxu0 %v48
    %v146 = vpop.f32.mrb[0].mxu0
    %v147 = vadd.f32 0.0, %v146
    %v148 = vpop.f32.mrb[0].mxu0
    %149 = vmatprep.mubr.f32.mxu0 0.0
    %150 = vmatmul.mubr.f32.gmra.mrb[0].mxu0 %v49
    %v151 = vpop.f32.mrb[0].mxu0
    %v152 = vadd.f32 0.0, %v151
    %v153 = vpop.f32.mrb[0].mxu0
    %154 = vmatprep.mubr.f32.mxu0 0.0
    %155 = vmatmul.mubr.f32.gmra.mrb[0].mxu0 %v50
    %v156 = vpop.f32.mrb[0].mxu0
    %v157 = vadd.f32 0.0, %v156
    %v158 = vpop.f32.mrb[0].mxu0
    %159 = vmatprep.mubr.f32.mxu0 0.0
    %160 = vmatmul.mubr.f32.gmra.mrb[0].mxu0 %v51
    %v161 = vpop.f32.mrb[0].mxu0
    %v162 = vadd.f32 0.0, %v161
    %v163 = vpop.f32.mrb[0].mxu0
    %164 = vmatprep.mubr.f32.mxu0 0.0
    %165 = vmatmul.mubr.f32.gmra.mrb[0].mxu0 %v52
    %v166 = vpop.f32.mrb[0].mxu0
    %v167 = vadd.f32 0.0, %v166
    %v168 = vpop.f32.mrb[0].mxu0
    %169 = vmatprep.mubr.f32.mxu0 0.0
    %170 = vmatmul.mubr.f32.gmra.mrb[0].mxu0 %v53
    %v171 = vpop.f32.mrb[0].mxu0
    %v172 = vadd.f32 0.0, %v171
    %v173 = vpop.f32.mrb[0].mxu0
    %174 = vdwg.mxu0
    %v175 = vmax.f32 %v137, 0.0
    %v176 = vmax.f32 %v142, 0.0
    %v177 = vmax.f32 %v147, 0.0
    %v178 = vmax.f32 %v152, 0.0
    %v179 = vmax.f32 %v157, 0.0
    %v180 = vmax.f32 %v162, 0.0
    %v181 = vmax.f32 %v167, 0.0
    %v182 = vmax.f32 %v172, 0.0
    %v183 = vld [vmem:[%s3] sm:$0xff]
    %vm184 = vcmask 523264
    %v186 = vsel %vm184, %v183, 0
    %188 = vmatprep.subr.mxu0 0.0
    %189 = vmatpush1.msra.mxu0 %v175
    %190 = vmatprep.subr.mxu0 0.0
    %191 = vmatpush1.msra.mxu0 %v176
    %192 = vmatprep.subr.mxu0 0.0
    %193 = vmatpush1.msra.mxu0 %v177
    %194 = vmatprep.subr.mxu0 0.0
    %195 = vmatpush1.msra.mxu0 %v178
    %196 = vmatprep.subr.mxu0 0.0
    %197 = vmatpush1.msra.mxu0 %v179
    %198 = vmatprep.subr.mxu0 0.0
    %199 = vmatpush1.msra.mxu0 %v180
    %200 = vmatprep.subr.mxu0 0.0
    %201 = vmatpush1.msra.mxu0 %v181
    %202 = vmatprep.subr.mxu0 0.0
    %203 = vmatpush1.msra.mxu0 %v182
    %204 = vmatprep.subr.mxu0 0.0
    %205 = vmatpush1.msra.mxu0 0.0
    %206 = vmatprep.subr.mxu0 0.0
    %207 = vmatpush1.msra.mxu0 0.0
    %208 = vmatprep.subr.mxu0 0.0
    %209 = vmatpush1.msra.mxu0 0.0
    %210 = vmatprep.subr.mxu0 0.0
    %211 = vmatpush1.msra.mxu0 0.0
    %212 = vmatprep.subr.mxu0 0.0
    %213 = vmatpush1.msra.mxu0 0.0
    %214 = vmatprep.subr.mxu0 0.0
    %215 = vmatpush1.msra.mxu0 0.0
    %216 = vmatprep.subr.mxu0 0.0
    %217 = vmatpush1.msra.mxu0 0.0
    %218 = vmatprep.subr.mxu0 0.0
    %219 = vmatpush1.msra.mxu0 0.0
    %220 = vmatprep.subr.mxu0 0.0
    %221 = vmatpush1.msra.mxu0 0.0
    %222 = vmatprep.subr.mxu0 0.0
    %223 = vmatpush1.msra.mxu0 0.0
    %224 = vmatprep.subr.mxu0 0.0
    %225 = vmatpush1.msra.mxu0 0.0
    %226 = vmatprep.subr.mxu0 0.0
    %227 = vmatpush1.msra.mxu0 0.0
    %228 = vmatprep.subr.mxu0 0.0
    %229 = vmatpush1.msra.mxu0 0.0
    %230 = vmatprep.subr.mxu0 0.0
    %231 = vmatpush1.msra.mxu0 0.0
    %232 = vmatprep.subr.mxu0 0.0
    %233 = vmatpush1.msra.mxu0 0.0
    %234 = vmatprep.subr.mxu0 0.0
    %235 = vmatpush1.msra.mxu0 0.0
    %236 = vmatprep.subr.mxu0 0.0
    %237 = vmatpush1.msra.mxu0 0.0
    %238 = vmatprep.subr.mxu0 0.0
    %239 = vmatpush1.msra.mxu0 0.0
    %240 = vmatprep.subr.mxu0 0.0
    %241 = vmatpush1.msra.mxu0 0.0
    %242 = vmatprep.subr.mxu0 0.0
    %243 = vmatpush1.msra.mxu0 0.0
    %244 = vmatprep.subr.mxu0 0.0
    %245 = vmatpush1.msra.mxu0 0.0
    %246 = vmatprep.subr.mxu0 0.0
    %247 = vmatpush1.msra.mxu0 0.0
    %248 = vmatprep.subr.mxu0 0.0
    %249 = vmatpush1.msra.mxu0 0.0
    %250 = vmatprep.subr.mxu0 0.0
    %251 = vmatpush1.msra.mxu0 0.0
    %252 = vmatprep.mubr.f32.mxu0 0.0
    %253 = vmatmul.mubr.f32.gmra.mrb[0].mxu0 %v186
    %v254 = vpop.f32.mrb[0].mxu0
    %v255 = vadd.f32 0.0, %v254
    %v256 = vpop.f32.mrb[0].mxu0
    %257 = vdwg.mxu0
    %v258 = vld [vmem:[%s2] sm:$0x1]
    %v260 = vlaneseq
    %v261 = vshrl.u32 %v260, 7
    %v262 = vsub.s32 0, %v261
    %v263 = vrot.slane %v258, %v262
    %v265 = vmul.f32 %v255, %v263
    %266 = vadd.xlane.f32.xlu0 %v265
    %v267 = vpop.xlane.xlu0 %266
    %268 = vst [vmem:[#allocation7] sm:$0xff] %v267
    // Predicated region
    $region26: #{tpu_custom_call.1} parent=1 // pred_check
      _
    $region27: #{tpu_custom_call.1} parent=1 // pred_check_branch
      %270 = sbr.rel (0) target = $region29
    $region28: #{tpu_custom_call.1} parent=1 // pred_region
      %s272 = ssub.s32 128, 128
      %273 = vsyncadd [#allocation4], %s272
      %s275 = sshll.u32 [#allocation7], 4
      %s276 = int_to_ptr.vmem [resolvable:$true] %s275
      %278 = dma.vmem_to_hbm [thread:$0]  %s276, 128, %s4, [#allocation4]
    $region29: #{tpu_custom_call.1} parent=1 // pred_fallthru
      _
    // Predicated region
    $region30: #{tpu_custom_call.1} parent=1 // pred_check
      _
    $region31: #{tpu_custom_call.1} parent=1 // pred_check_branch
      %280 = sbr.rel (0) target = $region33
    $region32: #{tpu_custom_call.1} parent=1 // pred_region
      %281 = dma.done [#allocation4], 128
    $region33: #{tpu_custom_call.1} parent=1 // pred_fallthru
      _
    %282 = vsyncpa [#allocation3], 1
    %283 = vsyncpa [#allocation6], 1
    %284 = vsyncpa [#allocation4], 1

</llo_original>
